<compile_context>
chip_gen: v5e
topology: v5e:2x2
jax: 0.10.0
libtpu: 0.0.40
codegen_flags: <defaults>
</compile_context>

<pallas_src>
import functools

import jax
import jax.numpy as jnp
from jax.experimental import pallas as pl
from jax.experimental.pallas import tpu as pltpu


def _hsv_l1_sums_kernel(x_ref, y_ref, out_ref, acc_ref, *, eps):
    """Accumulates sum|dH|, sum|dS|, sum|dV| over all pixels.

    x_ref, y_ref : VMEM (3, TR, 128) f32 tiles  (channels R, G, B of in [-1,1] images)
    out_ref      : SMEM (3,) f32  -> [sum|dH|, sum|dS|, sum|dV|]
    acc_ref      : VMEM (3, 8, 128) f32 partial-sum accumulator
    """
    i = pl.program_id(0)

    @pl.when(i == 0)
    def _init():
        acc_ref[...] = jnp.zeros_like(acc_ref)

    def get_hsv(ref):
        # img = im * 0.5 + 0.5
        r = ref[0] * 0.5 + 0.5
        g = ref[1] * 0.5 + 0.5
        b = ref[2] * 0.5 + 0.5
        maxv = jnp.maximum(jnp.maximum(r, g), b)
        minv = jnp.minimum(jnp.minimum(r, g), b)
        denom = maxv - minv + eps

        # Branch values (PyTorch write order: B, then G, then R, then min==max;
        # later writes win, so priority is min==max > R==max > G==max > B==max).
        hue_b = 4.0 + (r - g) / denom
        hue_g = 2.0 + (b - r) / denom
        x = (g - b) / denom              # in [-1, 1]  =>  x % 6 == x if x>=0 else x+6
        hue_r = jnp.where(x < 0.0, x + 6.0, x)

        hue = jnp.where(g == maxv, hue_g, hue_b)
        hue = jnp.where(r == maxv, hue_r, hue)
        hue = jnp.where(minv == maxv, 0.0, hue)
        hue = hue * (1.0 / 6.0)

        sat = (maxv - minv) / (maxv + eps)
        sat = jnp.where(maxv == 0.0, 0.0, sat)
        val = maxv
        return hue, sat, val

    hx, sx, vx = get_hsv(x_ref)
    hy, sy, vy = get_hsv(y_ref)

    tr = hx.shape[0]
    dh = jnp.abs(hx - hy).reshape(tr // 8, 8, 128)
    ds = jnp.abs(sx - sy).reshape(tr // 8, 8, 128)
    dv = jnp.abs(vx - vy).reshape(tr // 8, 8, 128)

    # VPU-only partial accumulation; full cross-lane reduce deferred to last step.
    acc_ref[0] += jnp.sum(dh, axis=0)
    acc_ref[1] += jnp.sum(ds, axis=0)
    acc_ref[2] += jnp.sum(dv, axis=0)

    @pl.when(i == pl.num_programs(0) - 1)
    def _finalize():
        out_ref[0] = jnp.sum(acc_ref[0])
        out_ref[1] = jnp.sum(acc_ref[1])
        out_ref[2] = jnp.sum(acc_ref[2])


def _slab_rows(n_pix, max_tr=1024):
    """Rows of the (3, rows, 128) slab and the row-tile size TR (multiple of 8)."""
    rows = pl.cdiv(n_pix, 128)
    rows = ((rows + 7) // 8) * 8
    if rows <= max_tr:
        return rows, rows
    rows = ((rows + max_tr - 1) // max_tr) * max_tr
    return rows, max_tr


def _pixel_slab(x, rows):
    """(B, 3, H, W) -> (3, rows, 128) f32, zero padded (layout-only wrapper op)."""
    B, C, H, W = x.shape
    flat = jnp.transpose(x, (1, 0, 2, 3)).reshape(C, B * H * W).astype(jnp.float32)
    pad = rows * 128 - B * H * W
    if pad:
        flat = jnp.pad(flat, ((0, 0), (0, pad)))
    return flat.reshape(C, rows, 128)


@functools.partial(jax.jit,
                   static_argnames=("eps", "threshold_h", "threshold_sv"))
def hsv_loss(input_im, target_im, *, eps=1e-07, threshold_h=0.03,
             threshold_sv=0.1):
    """JAX/Pallas equivalent of HSVLoss.forward (reduction='mean' L1 on H, S, V)."""
    B, C, H, W = input_im.shape
    if C != 3:
        raise ValueError("HSVLoss expects 3-channel (RGB) inputs")
    n_pix = B * H * W

    rows, tr = _slab_rows(n_pix)
    x = _pixel_slab(input_im, rows)
    y = _pixel_slab(target_im, rows)

    tile_spec = pl.BlockSpec((3, tr, 128), lambda i: (0, i, 0))

    sums = pl.pallas_call(
        functools.partial(_hsv_l1_sums_kernel, eps=eps),
        out_shape=jax.ShapeDtypeStruct((3,), jnp.float32),
        grid_spec=pltpu.PrefetchScalarGridSpec(
            num_scalar_prefetch=0,
            grid=(rows // tr,),
            in_specs=[tile_spec, tile_spec],
            out_specs=pl.BlockSpec(memory_space=pltpu.SMEM),
            scratch_shapes=[pltpu.VMEM((3, 8, 128), jnp.float32)],
        ),
        compiler_params=pltpu.CompilerParams(
            dimension_semantics=("arbitrary",)),
    )(x, y)

    inv_n = 1.0 / float(n_pix)
    loss_h = sums[0] * inv_n
    loss_s = sums[1] * inv_n
    loss_v = sums[2] * inv_n

    # loss_h[loss_h < threshold_h] = 0 ; then: if loss_h < 3*threshold_h -> 0
    loss_h = jnp.where(loss_h < threshold_h, 0.0, loss_h)
    loss_h = jnp.where(loss_h < threshold_h * 3.0, 0.0, loss_h)
    # if loss_h.item() > threshold_sv: zero the S and V losses
    keep_sv = loss_h <= threshold_sv
    loss_s = jnp.where(keep_sv, loss_s, 0.0)
    loss_v = jnp.where(keep_sv, loss_v, 0.0)

    return loss_h + 0.4 * loss_s + 0.4 * loss_v


def hsv_loss_reference(input_im, target_im, *, eps=1e-07, threshold_h=0.03,
                       threshold_sv=0.1):
    """Pure-JAX reference (mirrors the PyTorch module) for validation."""
    def get_hsv(im):
        img = im * 0.5 + 0.5
        r, g, b = img[:, 0], img[:, 1], img[:, 2]
        maxv = jnp.max(img, axis=1)
        minv = jnp.min(img, axis=1)
        denom = maxv - minv + eps
        hue_b = 4.0 + (r - g) / denom
        hue_g = 2.0 + (b - r) / denom
        hue_r = jnp.mod((g - b) / denom, 6.0)
        hue = jnp.where(g == maxv, hue_g, hue_b)
        hue = jnp.where(r == maxv, hue_r, hue)
        hue = jnp.where(minv == maxv, 0.0, hue)
        hue = hue / 6.0
        sat = (maxv - minv) / (maxv + eps)
        sat = jnp.where(maxv == 0.0, 0.0, sat)
        return hue, sat, maxv

    h1, s1, v1 = get_hsv(input_im)
    h2, s2, v2 = get_hsv(target_im)
    loss_h = jnp.mean(jnp.abs(h1 - h2))
    loss_h = jnp.where(loss_h < threshold_h, 0.0, loss_h)
    loss_h = jnp.where(loss_h < threshold_h * 3.0, 0.0, loss_h)
    loss_s = jnp.mean(jnp.abs(s1 - s2))
    loss_v = jnp.mean(jnp.abs(v1 - v2))
    loss_s = jnp.where(loss_h > threshold_sv, 0.0, loss_s)
    loss_v = jnp.where(loss_h > threshold_sv, 0.0, loss_v)
    return loss_h + 0.4 * loss_s + 0.4 * loss_v


if __name__ == "__main__":
    # Small RGB image batch, values in [-1, 1] (module maps to [0,1] via *0.5+0.5).
    B, C, H, W = 2, 3, 16, 16
    key = jax.random.PRNGKey(0)
    k1, k2 = jax.random.split(key)
    inp = jax.random.uniform(k1, (B, C, H, W), minval=-1.0, maxval=1.0,
                             dtype=jnp.float32)
    tgt = jax.random.uniform(k2, (B, C, H, W), minval=-1.0, maxval=1.0,
                             dtype=jnp.float32)

    loss = hsv_loss(inp, tgt)
    loss = jax.block_until_ready(loss)

    ref = hsv_loss_reference(inp, tgt)
    assert jnp.allclose(loss, ref, rtol=1e-5, atol=1e-5), (loss, ref)

    print("KERNEL_OK")
</pallas_src>

<mosaic_0001>
module attributes {stable_mosaic.version = 11 : i64} {
  func.func @_hsv_l1_sums_kernel(%arg0: i32, %arg1: memref<3x8x128xf32, #tpu.memory_space<vmem>>, %arg2: memref<3x8x128xf32, #tpu.memory_space<vmem>>, %arg3: memref<3xf32, #tpu.memory_space<smem>>, %arg4: memref<3x8x128xf32, #tpu.memory_space<vmem>>) attributes {dimension_semantics = [#tpu.dimension_semantics<arbitrary>], iteration_bounds = array<i64: 1>, scalar_prefetch = 0 : i64, scratch_operands = 1 : i64, tpu.core_type = #tpu.core_type<tc>, window_params = [{transform_indices = @transform_0, window_bounds = array<i64: 3, 8, 128>}, {transform_indices = @transform_1, window_bounds = array<i64: 3, 8, 128>}, {transform_indices = @transform_2, window_bounds = array<i64: 3>}]} {
    %c0_i32 = arith.constant 0 : i32
    %0 = arith.cmpi eq, %arg0, %c0_i32 : i32
    %1 = arith.extui %0 : i1 to i32
    %c0_i32_0 = arith.constant 0 : i32
    %2 = arith.cmpi ne, %1, %c0_i32_0 : i32
    scf.if %2 {
      %cst_70 = arith.constant 0.000000e+00 : f32
      %150 = vector.broadcast %cst_70 : f32 to vector<3x8x128xf32>
      %c0_71 = arith.constant 0 : index
      %c0_72 = arith.constant 0 : index
      %c0_73 = arith.constant 0 : index
      %151 = vector.load %arg4[%c0_71, %c0_72, %c0_73] : memref<3x8x128xf32, #tpu.memory_space<vmem>>, vector<3x8x128xf32>
      tpu.vector_store %arg4[%c0_71, %c0_72, %c0_73], %150 {strides = array<i32>} : memref<3x8x128xf32, #tpu.memory_space<vmem>>, vector<3x8x128xf32>,
    } else {
    }
    %c0 = arith.constant 0 : index
    %c0_1 = arith.constant 0 : index
    %c0_2 = arith.constant 0 : index
    %3 = vector.load %arg1[%c0, %c0_1, %c0_2] : memref<3x8x128xf32, #tpu.memory_space<vmem>>, vector<1x8x128xf32>
    %4 = vector.shape_cast %3 : vector<1x8x128xf32> to vector<8x128xf32>
    %cst = arith.constant 5.000000e-01 : f32
    %5 = vector.broadcast %cst : f32 to vector<8x128xf32>
    %6 = arith.mulf %4, %5 : vector<8x128xf32>
    %cst_3 = arith.constant 5.000000e-01 : f32
    %7 = vector.broadcast %cst_3 : f32 to vector<8x128xf32>
    %8 = arith.addf %6, %7 : vector<8x128xf32>
    %c1 = arith.constant 1 : index
    %c0_4 = arith.constant 0 : index
    %c0_5 = arith.constant 0 : index
    %9 = vector.load %arg1[%c1, %c0_4, %c0_5] : memref<3x8x128xf32, #tpu.memory_space<vmem>>, vector<1x8x128xf32>
    %10 = vector.shape_cast %9 : vector<1x8x128xf32> to vector<8x128xf32>
    %cst_6 = arith.constant 5.000000e-01 : f32
    %11 = vector.broadcast %cst_6 : f32 to vector<8x128xf32>
    %12 = arith.mulf %10, %11 : vector<8x128xf32>
    %cst_7 = arith.constant 5.000000e-01 : f32
    %13 = vector.broadcast %cst_7 : f32 to vector<8x128xf32>
    %14 = arith.addf %12, %13 : vector<8x128xf32>
    %c2 = arith.constant 2 : index
    %c0_8 = arith.constant 0 : index
    %c0_9 = arith.constant 0 : index
    %15 = vector.load %arg1[%c2, %c0_8, %c0_9] : memref<3x8x128xf32, #tpu.memory_space<vmem>>, vector<1x8x128xf32>
    %16 = vector.shape_cast %15 : vector<1x8x128xf32> to vector<8x128xf32>
    %cst_10 = arith.constant 5.000000e-01 : f32
    %17 = vector.broadcast %cst_10 : f32 to vector<8x128xf32>
    %18 = arith.mulf %16, %17 : vector<8x128xf32>
    %cst_11 = arith.constant 5.000000e-01 : f32
    %19 = vector.broadcast %cst_11 : f32 to vector<8x128xf32>
    %20 = arith.addf %18, %19 : vector<8x128xf32>
    %21 = arith.maximumf %8, %14 : vector<8x128xf32>
    %22 = arith.maximumf %21, %20 : vector<8x128xf32>
    %23 = arith.minimumf %8, %14 : vector<8x128xf32>
    %24 = arith.minimumf %23, %20 : vector<8x128xf32>
    %25 = arith.subf %22, %24 : vector<8x128xf32>
    %cst_12 = arith.constant 1.000000e-07 : f32
    %26 = vector.broadcast %cst_12 : f32 to vector<8x128xf32>
    %27 = arith.addf %25, %26 : vector<8x128xf32>
    %28 = arith.subf %8, %14 : vector<8x128xf32>
    %29 = arith.divf %28, %27 : vector<8x128xf32>
    %cst_13 = arith.constant 4.000000e+00 : f32
    %30 = vector.broadcast %cst_13 : f32 to vector<8x128xf32>
    %31 = arith.addf %30, %29 : vector<8x128xf32>
    %32 = arith.subf %20, %8 : vector<8x128xf32>
    %33 = arith.divf %32, %27 : vector<8x128xf32>
    %cst_14 = arith.constant 2.000000e+00 : f32
    %34 = vector.broadcast %cst_14 : f32 to vector<8x128xf32>
    %35 = arith.addf %34, %33 : vector<8x128xf32>
    %36 = arith.subf %14, %20 : vector<8x128xf32>
    %37 = arith.divf %36, %27 : vector<8x128xf32>
    %cst_15 = arith.constant 0.000000e+00 : f32
    %38 = vector.broadcast %cst_15 : f32 to vector<8x128xf32>
    %39 = arith.cmpf olt, %37, %38 : vector<8x128xf32>
    %cst_16 = arith.constant 6.000000e+00 : f32
    %40 = vector.broadcast %cst_16 : f32 to vector<8x128xf32>
    %41 = arith.addf %37, %40 : vector<8x128xf32>
    %42 = arith.select %39, %41, %37 : vector<8x128xi1>, vector<8x128xf32>
    %43 = arith.cmpf oeq, %14, %22 : vector<8x128xf32>
    %44 = arith.select %43, %35, %31 : vector<8x128xi1>, vector<8x128xf32>
    %45 = arith.cmpf oeq, %8, %22 : vector<8x128xf32>
    %46 = arith.select %45, %42, %44 : vector<8x128xi1>, vector<8x128xf32>
    %47 = arith.cmpf oeq, %24, %22 : vector<8x128xf32>
    %cst_17 = arith.constant 0.000000e+00 : f32
    %48 = vector.broadcast %cst_17 : f32 to vector<8x128xf32>
    %49 = arith.select %47, %48, %46 : vector<8x128xi1>, vector<8x128xf32>
    %cst_18 = arith.constant 0.166666672 : f32
    %50 = vector.broadcast %cst_18 : f32 to vector<8x128xf32>
    %51 = arith.mulf %49, %50 : vector<8x128xf32>
    %52 = arith.subf %22, %24 : vector<8x128xf32>
    %cst_19 = arith.constant 1.000000e-07 : f32
    %53 = vector.broadcast %cst_19 : f32 to vector<8x128xf32>
    %54 = arith.addf %22, %53 : vector<8x128xf32>
    %55 = arith.divf %52, %54 : vector<8x128xf32>
    %cst_20 = arith.constant 0.000000e+00 : f32
    %56 = vector.broadcast %cst_20 : f32 to vector<8x128xf32>
    %57 = arith.cmpf oeq, %22, %56 : vector<8x128xf32>
    %cst_21 = arith.constant 0.000000e+00 : f32
    %58 = vector.broadcast %cst_21 : f32 to vector<8x128xf32>
    %59 = arith.select %57, %58, %55 : vector<8x128xi1>, vector<8x128xf32>
    %c0_22 = arith.constant 0 : index
    %c0_23 = arith.constant 0 : index
    %c0_24 = arith.constant 0 : index
    %60 = vector.load %arg2[%c0_22, %c0_23, %c0_24] : memref<3x8x128xf32, #tpu.memory_space<vmem>>, vector<1x8x128xf32>
    %61 = vector.shape_cast %60 : vector<1x8x128xf32> to vector<8x128xf32>
    %cst_25 = arith.constant 5.000000e-01 : f32
    %62 = vector.broadcast %cst_25 : f32 to vector<8x128xf32>
    %63 = arith.mulf %61, %62 : vector<8x128xf32>
    %cst_26 = arith.constant 5.000000e-01 : f32
    %64 = vector.broadcast %cst_26 : f32 to vector<8x128xf32>
    %65 = arith.addf %63, %64 : vector<8x128xf32>
    %c1_27 = arith.constant 1 : index
    %c0_28 = arith.constant 0 : index
    %c0_29 = arith.constant 0 : index
    %66 = vector.load %arg2[%c1_27, %c0_28, %c0_29] : memref<3x8x128xf32, #tpu.memory_space<vmem>>, vector<1x8x128xf32>
    %67 = vector.shape_cast %66 : vector<1x8x128xf32> to vector<8x128xf32>
    %cst_30 = arith.constant 5.000000e-01 : f32
    %68 = vector.broadcast %cst_30 : f32 to vector<8x128xf32>
    %69 = arith.mulf %67, %68 : vector<8x128xf32>
    %cst_31 = arith.constant 5.000000e-01 : f32
    %70 = vector.broadcast %cst_31 : f32 to vector<8x128xf32>
    %71 = arith.addf %69, %70 : vector<8x128xf32>
    %c2_32 = arith.constant 2 : index
    %c0_33 = arith.constant 0 : index
    %c0_34 = arith.constant 0 : index
    %72 = vector.load %arg2[%c2_32, %c0_33, %c0_34] : memref<3x8x128xf32, #tpu.memory_space<vmem>>, vector<1x8x128xf32>
    %73 = vector.shape_cast %72 : vector<1x8x128xf32> to vector<8x128xf32>
    %cst_35 = arith.constant 5.000000e-01 : f32
    %74 = vector.broadcast %cst_35 : f32 to vector<8x128xf32>
    %75 = arith.mulf %73, %74 : vector<8x128xf32>
    %cst_36 = arith.constant 5.000000e-01 : f32
    %76 = vector.broadcast %cst_36 : f32 to vector<8x128xf32>
    %77 = arith.addf %75, %76 : vector<8x128xf32>
    %78 = arith.maximumf %65, %71 : vector<8x128xf32>
    %79 = arith.maximumf %78, %77 : vector<8x128xf32>
    %80 = arith.minimumf %65, %71 : vector<8x128xf32>
    %81 = arith.minimumf %80, %77 : vector<8x128xf32>
    %82 = arith.subf %79, %81 : vector<8x128xf32>
    %cst_37 = arith.constant 1.000000e-07 : f32
    %83 = vector.broadcast %cst_37 : f32 to vector<8x128xf32>
    %84 = arith.addf %82, %83 : vector<8x128xf32>
    %85 = arith.subf %65, %71 : vector<8x128xf32>
    %86 = arith.divf %85, %84 : vector<8x128xf32>
    %cst_38 = arith.constant 4.000000e+00 : f32
    %87 = vector.broadcast %cst_38 : f32 to vector<8x128xf32>
    %88 = arith.addf %87, %86 : vector<8x128xf32>
    %89 = arith.subf %77, %65 : vector<8x128xf32>
    %90 = arith.divf %89, %84 : vector<8x128xf32>
    %cst_39 = arith.constant 2.000000e+00 : f32
    %91 = vector.broadcast %cst_39 : f32 to vector<8x128xf32>
    %92 = arith.addf %91, %90 : vector<8x128xf32>
    %93 = arith.subf %71, %77 : vector<8x128xf32>
    %94 = arith.divf %93, %84 : vector<8x128xf32>
    %cst_40 = arith.constant 0.000000e+00 : f32
    %95 = vector.broadcast %cst_40 : f32 to vector<8x128xf32>
    %96 = arith.cmpf olt, %94, %95 : vector<8x128xf32>
    %cst_41 = arith.constant 6.000000e+00 : f32
    %97 = vector.broadcast %cst_41 : f32 to vector<8x128xf32>
    %98 = arith.addf %94, %97 : vector<8x128xf32>
    %99 = arith.select %96, %98, %94 : vector<8x128xi1>, vector<8x128xf32>
    %100 = arith.cmpf oeq, %71, %79 : vector<8x128xf32>
    %101 = arith.select %100, %92, %88 : vector<8x128xi1>, vector<8x128xf32>
    %102 = arith.cmpf oeq, %65, %79 : vector<8x128xf32>
    %103 = arith.select %102, %99, %101 : vector<8x128xi1>, vector<8x128xf32>
    %104 = arith.cmpf oeq, %81, %79 : vector<8x128xf32>
    %cst_42 = arith.constant 0.000000e+00 : f32
    %105 = vector.broadcast %cst_42 : f32 to vector<8x128xf32>
    %106 = arith.select %104, %105, %103 : vector<8x128xi1>, vector<8x128xf32>
    %cst_43 = arith.constant 0.166666672 : f32
    %107 = vector.broadcast %cst_43 : f32 to vector<8x128xf32>
    %108 = arith.mulf %106, %107 : vector<8x128xf32>
    %109 = arith.subf %79, %81 : vector<8x128xf32>
    %cst_44 = arith.constant 1.000000e-07 : f32
    %110 = vector.broadcast %cst_44 : f32 to vector<8x128xf32>
    %111 = arith.addf %79, %110 : vector<8x128xf32>
    %112 = arith.divf %109, %111 : vector<8x128xf32>
    %cst_45 = arith.constant 0.000000e+00 : f32
    %113 = vector.broadcast %cst_45 : f32 to vector<8x128xf32>
    %114 = arith.cmpf oeq, %79, %113 : vector<8x128xf32>
    %cst_46 = arith.constant 0.000000e+00 : f32
    %115 = vector.broadcast %cst_46 : f32 to vector<8x128xf32>
    %116 = arith.select %114, %115, %112 : vector<8x128xi1>, vector<8x128xf32>
    %117 = arith.subf %51, %108 : vector<8x128xf32>
    %118 = math.absf %117 : vector<8x128xf32>
    %119 = vector.shape_cast %118 : vector<8x128xf32> to vector<1x8x128xf32>
    %120 = arith.subf %59, %116 : vector<8x128xf32>
    %121 = math.absf %120 : vector<8x128xf32>
    %122 = vector.shape_cast %121 : vector<8x128xf32> to vector<1x8x128xf32>
    %123 = arith.subf %22, %79 : vector<8x128xf32>
    %124 = math.absf %123 : vector<8x128xf32>
    %125 = vector.shape_cast %124 : vector<8x128xf32> to vector<1x8x128xf32>
    %c0_47 = arith.constant 0 : index
    %c0_48 = arith.constant 0 : index
    %c0_49 = arith.constant 0 : index
    %126 = vector.load %arg4[%c0_47, %c0_48, %c0_49] : memref<3x8x128xf32, #tpu.memory_space<vmem>>, vector<1x8x128xf32>
    %127 = vector.shape_cast %126 : vector<1x8x128xf32> to vector<8x128xf32>
    %cst_50 = arith.constant dense<0.000000e+00> : vector<8x128xf32>
    %128 = vector.multi_reduction <add>, %119, %cst_50 [0] : vector<1x8x128xf32> to vector<8x128xf32>
    %129 = arith.addf %127, %128 : vector<8x128xf32>
    %c0_51 = arith.constant 0 : index
    %c0_52 = arith.constant 0 : index
    %c0_53 = arith.constant 0 : index
    %130 = vector.load %arg4[%c0_51, %c0_52, %c0_53] : memref<3x8x128xf32, #tpu.memory_space<vmem>>, vector<1x8x128xf32>
    %131 = vector.shape_cast %130 : vector<1x8x128xf32> to vector<8x128xf32>
    %132 = vector.shape_cast %129 : vector<8x128xf32> to vector<1x8x128xf32>
    tpu.vector_store %arg4[%c0_51, %c0_52, %c0_53], %132 {strides = array<i32>} : memref<3x8x128xf32, #tpu.memory_space<vmem>>, vector<1x8x128xf32>,
    %c1_54 = arith.constant 1 : index
    %c0_55 = arith.constant 0 : index
    %c0_56 = arith.constant 0 : index
    %133 = vector.load %arg4[%c1_54, %c0_55, %c0_56] : memref<3x8x128xf32, #tpu.memory_space<vmem>>, vector<1x8x128xf32>
    %134 = vector.shape_cast %133 : vector<1x8x128xf32> to vector<8x128xf32>
    %cst_57 = arith.constant dense<0.000000e+00> : vector<8x128xf32>
    %135 = vector.multi_reduction <add>, %122, %cst_57 [0] : vector<1x8x128xf32> to vector<8x128xf32>
    %136 = arith.addf %134, %135 : vector<8x128xf32>
    %c1_58 = arith.constant 1 : index
    %c0_59 = arith.constant 0 : index
    %c0_60 = arith.constant 0 : index
    %137 = vector.load %arg4[%c1_58, %c0_59, %c0_60] : memref<3x8x128xf32, #tpu.memory_space<vmem>>, vector<1x8x128xf32>
    %138 = vector.shape_cast %137 : vector<1x8x128xf32> to vector<8x128xf32>
    %139 = vector.shape_cast %136 : vector<8x128xf32> to vector<1x8x128xf32>
    tpu.vector_store %arg4[%c1_58, %c0_59, %c0_60], %139 {strides = array<i32>} : memref<3x8x128xf32, #tpu.memory_space<vmem>>, vector<1x8x128xf32>,
    %c2_61 = arith.constant 2 : index
    %c0_62 = arith.constant 0 : index
    %c0_63 = arith.constant 0 : index
    %140 = vector.load %arg4[%c2_61, %c0_62, %c0_63] : memref<3x8x128xf32, #tpu.memory_space<vmem>>, vector<1x8x128xf32>
    %141 = vector.shape_cast %140 : vector<1x8x128xf32> to vector<8x128xf32>
    %cst_64 = arith.constant dense<0.000000e+00> : vector<8x128xf32>
    %142 = vector.multi_reduction <add>, %125, %cst_64 [0] : vector<1x8x128xf32> to vector<8x128xf32>
    %143 = arith.addf %141, %142 : vector<8x128xf32>
    %c2_65 = arith.constant 2 : index
    %c0_66 = arith.constant 0 : index
    %c0_67 = arith.constant 0 : index
    %144 = vector.load %arg4[%c2_65, %c0_66, %c0_67] : memref<3x8x128xf32, #tpu.memory_space<vmem>>, vector<1x8x128xf32>
    %145 = vector.shape_cast %144 : vector<1x8x128xf32> to vector<8x128xf32>
    %146 = vector.shape_cast %143 : vector<8x128xf32> to vector<1x8x128xf32>
    tpu.vector_store %arg4[%c2_65, %c0_66, %c0_67], %146 {strides = array<i32>} : memref<3x8x128xf32, #tpu.memory_space<vmem>>, vector<1x8x128xf32>,
    %c0_i32_68 = arith.constant 0 : i32
    %147 = arith.cmpi eq, %arg0, %c0_i32_68 : i32
    %148 = arith.extui %147 : i1 to i32
    %c0_i32_69 = arith.constant 0 : i32
    %149 = arith.cmpi ne, %148, %c0_i32_69 : i32
    scf.if %149 {
      %c0_70 = arith.constant 0 : index
      %c0_71 = arith.constant 0 : index
      %c0_72 = arith.constant 0 : index
      %150 = vector.load %arg4[%c0_70, %c0_71, %c0_72] : memref<3x8x128xf32, #tpu.memory_space<vmem>>, vector<1x8x128xf32>
      %151 = vector.shape_cast %150 : vector<1x8x128xf32> to vector<8x128xf32>
      %152 = vector.shape_cast %151 : vector<8x128xf32> to vector<1x8x128xf32>
      %cst_73 = arith.constant dense<0.000000e+00> : vector<1xf32>
      %153 = vector.multi_reduction <add>, %152, %cst_73 [1, 2] : vector<1x8x128xf32> to vector<1xf32>
      %154 = vector.shape_cast %153 : vector<1xf32> to vector<1x1x1xf32>
      %155 = vector.extract %154[0, 0, 0] : f32 from vector<1x1x1xf32>
      %c0_74 = arith.constant 0 : index
      %156 = memref.load %arg3[%c0_74] : memref<3xf32, #tpu.memory_space<smem>>
      memref.store %155, %arg3[%c0_74] : memref<3xf32, #tpu.memory_space<smem>>
      %c1_75 = arith.constant 1 : index
      %c0_76 = arith.constant 0 : index
      %c0_77 = arith.constant 0 : index
      %157 = vector.load %arg4[%c1_75, %c0_76, %c0_77] : memref<3x8x128xf32, #tpu.memory_space<vmem>>, vector<1x8x128xf32>
      %158 = vector.shape_cast %157 : vector<1x8x128xf32> to vector<8x128xf32>
      %159 = vector.shape_cast %158 : vector<8x128xf32> to vector<1x8x128xf32>
      %cst_78 = arith.constant dense<0.000000e+00> : vector<1xf32>
      %160 = vector.multi_reduction <add>, %159, %cst_78 [1, 2] : vector<1x8x128xf32> to vector<1xf32>
      %161 = vector.shape_cast %160 : vector<1xf32> to vector<1x1x1xf32>
      %162 = vector.extract %161[0, 0, 0] : f32 from vector<1x1x1xf32>
      %c1_79 = arith.constant 1 : index
      %163 = memref.load %arg3[%c1_79] : memref<3xf32, #tpu.memory_space<smem>>
      memref.store %162, %arg3[%c1_79] : memref<3xf32, #tpu.memory_space<smem>>
      %c2_80 = arith.constant 2 : index
      %c0_81 = arith.constant 0 : index
      %c0_82 = arith.constant 0 : index
      %164 = vector.load %arg4[%c2_80, %c0_81, %c0_82] : memref<3x8x128xf32, #tpu.memory_space<vmem>>, vector<1x8x128xf32>
      %165 = vector.shape_cast %164 : vector<1x8x128xf32> to vector<8x128xf32>
      %166 = vector.shape_cast %165 : vector<8x128xf32> to vector<1x8x128xf32>
      %cst_83 = arith.constant dense<0.000000e+00> : vector<1xf32>
      %167 = vector.multi_reduction <add>, %166, %cst_83 [1, 2] : vector<1x8x128xf32> to vector<1xf32>
      %168 = vector.shape_cast %167 : vector<1xf32> to vector<1x1x1xf32>
      %169 = vector.extract %168[0, 0, 0] : f32 from vector<1x1x1xf32>
      %c2_84 = arith.constant 2 : index
      %170 = memref.load %arg3[%c2_84] : memref<3xf32, #tpu.memory_space<smem>>
      memref.store %169, %arg3[%c2_84] : memref<3xf32, #tpu.memory_space<smem>>
    } else {
    }
    return
  }
  func.func @transform_0(%arg0: i32) -> (i32, i32, i32) {
    %c0_i32 = arith.constant 0 : i32
    %c0_i32_0 = arith.constant 0 : i32
    %c0_i32_1 = arith.constant 0 : i32
    return %c0_i32, %arg0, %c0_i32_0 : i32, i32, i32
  }
  func.func @transform_1(%arg0: i32) -> (i32, i32, i32) {
    %c0_i32 = arith.constant 0 : i32
    %c0_i32_0 = arith.constant 0 : i32
    %c0_i32_1 = arith.constant 0 : i32
    return %c0_i32, %arg0, %c0_i32_0 : i32, i32, i32
  }
  func.func @transform_2(%arg0: i32) -> i32 {
    %c0_i32 = arith.constant 0 : i32
    %c0_i32_0 = arith.constant 0 : i32
    return %c0_i32 : i32
  }
}

</mosaic_0001>

<llo_original>
// kernel: hsv_loss.1
$region0: #{hsv_loss.1}
  #allocation0 [shape = 'u32[]', space=smem, size = 0x4, offset = 0x4, fixed_abs, tag = 'smem constant byte address 0x4 - core index']
  #allocation1 [shape = 'u32[72,128]{1,0:T(1,128)}', space=vmem, size = 0x9000, scoped, tag = 'internal scratch']
  #allocation2 [shape = 'f32[3,8,128]{2,1,0:T(8,128)}', space=vmem, size = 0x3000, scoped, tag = 'scratch operand']
  %s0 = inlined_call_operand.vmem [shape: f32[3,8,128], index: 0, kind: input, shape index: {}]
  %s1 = inlined_call_operand.vmem [shape: f32[3,8,128], index: 1, kind: input, shape index: {}]
  %s2 = inlined_call_operand.vmem [shape: f32[3], index: 2, kind: output, shape index: {}]
  %s3 = sld [smem:[#allocation0]]
  $region26: #{hsv_loss.1} parent=0
    _
  %s5 = ssub.s32 1, %s3
  %s6 = scalar_select 0, %s5, %s3
  $region1: #{hsv_loss.1} parent=0
    #allocation3 [shape = 'u8[512]{0}', space=smem, size = 0x200, scoped, tag = 'output window, operand 0, single buffered']
    #allocation4 [shape = 's32[1]{0}', space=sflag, size = 0x4, scoped, tag = 'scoped memory for hsv_loss.1']
    %7 = vsyncpa [#allocation4], 0
    // Predicated region
    $region2: #{hsv_loss.1} parent=1 // pred_check
      _
    $region3: #{hsv_loss.1} parent=1 // pred_check_branch
      %9 = sbr.rel (0) target = $region5
    $region4: #{hsv_loss.1} parent=1 // pred_region
      _
    $region5: #{hsv_loss.1} parent=1 // pred_fallthru
      _
    // Predicated region
    $region6: #{hsv_loss.1} parent=1 // pred_check
      _
    $region7: #{hsv_loss.1} parent=1 // pred_check_branch
      %11 = sbr.rel (0) target = $region9
    $region8: #{hsv_loss.1} parent=1 // pred_region
      _
    $region9: #{hsv_loss.1} parent=1 // pred_fallthru
      _
    %p12 = scmp.eq.s32.totalorder 0, 0
    // Predicated region
    $region10: #{hsv_loss.1} parent=1 // pred_check
      %p13 = pneg %p12
    $region11: #{hsv_loss.1} parent=1 // pred_check_branch
      %15 = sbr.rel (%p13) target = $region13
    $region12: #{hsv_loss.1} parent=1 // pred_region
      %16 = vst [vmem:[#allocation2] sm:$0xff] 0.0
      %17 = vst [vmem:[#allocation2 + $0x8] sm:$0xff] 0.0
      %18 = vst [vmem:[#allocation2 + $0x10] sm:$0xff] 0.0
    $region13: #{hsv_loss.1} parent=1 // pred_fallthru
      _
    %v19 = vld [vmem:[%s0] sm:$0xff]
    %v20 = vmul.f32 %v19, 0.5
    %v21 = vadd.f32 %v20, 0.5
    %s22 = scalar_lea.vmem %s0, 8
    %v23 = vld [vmem:[%s22] sm:$0xff]
    %v24 = vmul.f32 %v23, 0.5
    %v25 = vadd.f32 %v24, 0.5
    %s26 = scalar_lea.vmem %s0, 16
    %v27 = vld [vmem:[%s26] sm:$0xff]
    %v28 = vmul.f32 %v27, 0.5
    %v29 = vadd.f32 %v28, 0.5
    %v30 = vmax.f32 %v21, %v25
    %v31 = vmax.f32 %v30, %v29
    %v32 = vmin.f32 %v21, %v25
    %v33 = vmin.f32 %v32, %v29
    %v34 = vsub.f32 %v31, %v33
    %v35 = vadd.f32 %v34, 1e-07
    %v36 = vsub.f32 %v21, %v25
    %v37 = vrcp.pop %v35
    %v38 = vmul.f32 %v35, %v37
    %v39 = vsub.f32 1.0, %v38
    %v40 = vmul.f32 %v37, %v39
    %v41 = vadd.f32 %v37, %v40
    %vm42 = vweird.f32 %v35
    %vm43 = vweird.f32 %v37
    %vm44 = vmor %vm42, %vm43
    %v45 = vsel %vm44, %v37, %v41
    %v46 = vand.u32 2147483647, %v35
    %vm47 = vcmp.eq.f32.partialorder %v46, 8.507059e+37
    %v48 = vand.u32 %v35, 2147483648
    %v49 = vor.u32 1.1754944e-38, %v48
    %v50 = vsel %vm47, %v49, %v45
    %v51 = vmul.f32 %v36, %v50
    %v52 = vadd.f32 %v51, 4.0
    %v53 = vsub.f32 %v29, %v21
    %v54 = vmul.f32 %v53, %v50
    %v55 = vadd.f32 %v54, 2.0
    %v56 = vsub.f32 %v25, %v29
    %v57 = vmul.f32 %v56, %v50
    %vm58 = vcmp.lt.f32.partialorder %v57, 0.0
    %v59 = vadd.f32 %v57, 6.0
    %v60 = vsel %vm58, %v59, %v57
    %vm61 = vcmp.eq.f32.partialorder %v25, %v31
    %v62 = vsel %vm61, %v55, %v52
    %vm63 = vcmp.eq.f32.partialorder %v21, %v31
    %v64 = vsel %vm63, %v60, %v62
    %vm65 = vcmp.eq.f32.partialorder %v33, %v31
    %v66 = vsel %vm65, 0.0, %v64
    %v67 = vmul.f32 %v66, 0.16666667
    %v68 = vadd.f32 %v31, 1e-07
    %v69 = vrcp.pop %v68
    %v70 = vmul.f32 %v68, %v69
    %v71 = vsub.f32 1.0, %v70
    %v72 = vmul.f32 %v69, %v71
    %v73 = vadd.f32 %v69, %v72
    %vm74 = vweird.f32 %v68
    %vm75 = vweird.f32 %v69
    %vm76 = vmor %vm74, %vm75
    %v77 = vsel %vm76, %v69, %v73
    %v78 = vand.u32 2147483647, %v68
    %vm79 = vcmp.eq.f32.partialorder %v78, 8.507059e+37
    %v80 = vand.u32 %v68, 2147483648
    %v81 = vor.u32 1.1754944e-38, %v80
    %v82 = vsel %vm79, %v81, %v77
    %v83 = vmul.f32 %v34, %v82
    %vm84 = vcmp.eq.f32.partialorder %v31, 0.0
    %v85 = vsel %vm84, 0.0, %v83
    %v86 = vld [vmem:[%s1] sm:$0xff]
    %v87 = vmul.f32 %v86, 0.5
    %v88 = vadd.f32 %v87, 0.5
    %s89 = scalar_lea.vmem %s1, 8
    %v90 = vld [vmem:[%s89] sm:$0xff]
    %v91 = vmul.f32 %v90, 0.5
    %v92 = vadd.f32 %v91, 0.5
    %s93 = scalar_lea.vmem %s1, 16
    %v94 = vld [vmem:[%s93] sm:$0xff]
    %v95 = vmul.f32 %v94, 0.5
    %v96 = vadd.f32 %v95, 0.5
    %v97 = vmax.f32 %v88, %v92
    %v98 = vmax.f32 %v97, %v96
    %v99 = vmin.f32 %v88, %v92
    %v100 = vmin.f32 %v99, %v96
    %v101 = vsub.f32 %v98, %v100
    %v102 = vadd.f32 %v101, 1e-07
    %v103 = vsub.f32 %v88, %v92
    %v104 = vrcp.pop %v102
    %v105 = vmul.f32 %v102, %v104
    %v106 = vsub.f32 1.0, %v105
    %v107 = vmul.f32 %v104, %v106
    %v108 = vadd.f32 %v104, %v107
    %vm109 = vweird.f32 %v102
    %vm110 = vweird.f32 %v104
    %vm111 = vmor %vm109, %vm110
    %v112 = vsel %vm111, %v104, %v108
    %v113 = vand.u32 2147483647, %v102
    %vm114 = vcmp.eq.f32.partialorder %v113, 8.507059e+37
    %v115 = vand.u32 %v102, 2147483648
    %v116 = vor.u32 1.1754944e-38, %v115
    %v117 = vsel %vm114, %v116, %v112
    %v118 = vmul.f32 %v103, %v117
    %v119 = vadd.f32 %v118, 4.0
    %v120 = vsub.f32 %v96, %v88
    %v121 = vmul.f32 %v120, %v117
    %v122 = vadd.f32 %v121, 2.0
    %v123 = vsub.f32 %v92, %v96
    %v124 = vmul.f32 %v123, %v117
    %vm125 = vcmp.lt.f32.partialorder %v124, 0.0
    %v126 = vadd.f32 %v124, 6.0
    %v127 = vsel %vm125, %v126, %v124
    %vm128 = vcmp.eq.f32.partialorder %v92, %v98
    %v129 = vsel %vm128, %v122, %v119
    %vm130 = vcmp.eq.f32.partialorder %v88, %v98
    %v131 = vsel %vm130, %v127, %v129
    %vm132 = vcmp.eq.f32.partialorder %v100, %v98
    %v133 = vsel %vm132, 0.0, %v131
    %v134 = vmul.f32 %v133, 0.16666667
    %v135 = vadd.f32 %v98, 1e-07
    %v136 = vrcp.pop %v135
    %v137 = vmul.f32 %v135, %v136
    %v138 = vsub.f32 1.0, %v137
    %v139 = vmul.f32 %v136, %v138
    %v140 = vadd.f32 %v136, %v139
    %vm141 = vweird.f32 %v135
    %vm142 = vweird.f32 %v136
    %vm143 = vmor %vm141, %vm142
    %v144 = vsel %vm143, %v136, %v140
    %v145 = vand.u32 2147483647, %v135
    %vm146 = vcmp.eq.f32.partialorder %v145, 8.507059e+37
    %v147 = vand.u32 %v135, 2147483648
    %v148 = vor.u32 1.1754944e-38, %v147
    %v149 = vsel %vm146, %v148, %v144
    %v150 = vmul.f32 %v101, %v149
    %vm151 = vcmp.eq.f32.partialorder %v98, 0.0
    %v152 = vsel %vm151, 0.0, %v150
    %v153 = vsub.f32 %v67, %v134
    %v154 = vand.u32 2147483647, %v153
    %v155 = vsub.f32 %v85, %v152
    %v156 = vand.u32 2147483647, %v155
    %v157 = vsub.f32 %v31, %v98
    %v158 = vand.u32 2147483647, %v157
    %v159 = vld [vmem:[#allocation2] sm:$0xff]
    %v160 = vadd.f32 %v154, 0.0
    %v161 = vadd.f32 %v159, %v160
    %162 = vst [vmem:[#allocation2] sm:$0xff] %v161
    %s163 = scalar_lea.vmem [#allocation2], 8
    %v164 = vld [vmem:[%s163] sm:$0xff]
    %v165 = vadd.f32 %v156, 0.0
    %v166 = vadd.f32 %v164, %v165
    %167 = vst [vmem:[%s163] sm:$0xff] %v166
    %s168 = scalar_lea.vmem [#allocation2], 16
    %v169 = vld [vmem:[%s168] sm:$0xff]
    %v170 = vadd.f32 %v158, 0.0
    %v171 = vadd.f32 %v169, %v170
    %172 = vst [vmem:[%s168] sm:$0xff] %v171
    // Predicated region
    $region14: #{hsv_loss.1} parent=1 // pred_check
      %p173 = pneg %p12
    $region15: #{hsv_loss.1} parent=1 // pred_check_branch
      %175 = sbr.rel (%p173) target = $region17
    $region16: #{hsv_loss.1} parent=1 // pred_region
      %v176 = vld [vmem:[#allocation2] sm:$0xff]
      %177 = vadd.xlane.f32.xlu0 %v176
      %v178 = vpop.xlane.xlu0 %177
      %v179 = vrot.slane %v178, 4
      %v180 = vadd.f32 %v178, %v179
      %v181 = vrot.slane %v180, 2
      %v182 = vadd.f32 %v180, %v181
      %v183 = vrot.slane %v182, 1
      %v184 = vadd.f32 %v182, %v183
      %s185 = vtos %v184
      %s186 = scalar_lea.smem [#allocation3], 0
      %187 = sst [smem:[%s186]] %s185
      %v188 = vld [vmem:[%s163] sm:$0xff]
      %189 = vadd.xlane.f32.xlu0 %v188
      %v190 = vpop.xlane.xlu0 %189
      %v191 = vrot.slane %v190, 4
      %v192 = vadd.f32 %v190, %v191
      %v193 = vrot.slane %v192, 2
      %v194 = vadd.f32 %v192, %v193
      %v195 = vrot.slane %v194, 1
      %v196 = vadd.f32 %v194, %v195
      %s197 = vtos %v196
      %s198 = scalar_lea.smem [#allocation3], 1
      %199 = sst [smem:[%s198]] %s197
      %v200 = vld [vmem:[%s168] sm:$0xff]
      %201 = vadd.xlane.f32.xlu0 %v200
      %v202 = vpop.xlane.xlu0 %201
      %v203 = vrot.slane %v202, 4
      %v204 = vadd.f32 %v202, %v203
      %v205 = vrot.slane %v204, 2
      %v206 = vadd.f32 %v204, %v205
      %v207 = vrot.slane %v206, 1
      %v208 = vadd.f32 %v206, %v207
      %s209 = vtos %v208
      %s210 = scalar_lea.smem [#allocation3], 2
      %211 = sst [smem:[%s210]] %s209
    $region17: #{hsv_loss.1} parent=1 // pred_fallthru
      _
    // Predicated region
    $region18: #{hsv_loss.1} parent=1 // pred_check
      _
    $region19: #{hsv_loss.1} parent=1 // pred_check_branch
      %213 = sbr.rel (0) target = $region21
    $region20: #{hsv_loss.1} parent=1 // pred_region
      %215 = vsyncadd [#allocation4], 0
      %s217 = sshll.u32 %s2, 4
      %s218 = int_to_ptr.vmem [resolvable:$true] %s217
      %220 = dma.smem_to_vmem [#allocation3], 16, %s218, [#allocation4]
    $region21: #{hsv_loss.1} parent=1 // pred_fallthru
      _
    // Predicated region
    $region22: #{hsv_loss.1} parent=1 // pred_check
      _
    $region23: #{hsv_loss.1} parent=1 // pred_check_branch
      %222 = sbr.rel (0) target = $region25
    $region24: #{hsv_loss.1} parent=1 // pred_region
      %224 = dma.done [#allocation4], 16
    $region25: #{hsv_loss.1} parent=1 // pred_fallthru
      _
    %225 = sfence
    %226 = vsyncpa [#allocation4], 1

</llo_original>
